<compile_context>
chip_gen: v7x
topology: tpu7x:2x2x1
jax: 0.10.0
libtpu: 0.0.40
codegen_flags: <defaults>
</compile_context>

<pallas_src>
import functools
import math

import jax
import jax.numpy as jnp
import numpy as np
from jax import lax
from jax.experimental import pallas as pl
from jax.experimental.pallas import tpu as pltpu


def create_positional_encoding(max_len: int, d_model: int) -> jnp.ndarray:
    """Exact replica of Embeddings.create_positional_encoding (minus unsqueeze)."""
    pe = np.zeros((max_len, d_model), dtype=np.float32)
    for pos in range(max_len):
        for i in range(0, d_model, 2):
            pe[pos, i] = math.sin(pos / 10000 ** (2 * i / d_model))
            pe[pos, i + 1] = math.cos(pos / 10000 ** (2 * (i + 1) / d_model))
    return jnp.asarray(pe)


def _round_up(x: int, m: int) -> int:
    return ((x + m - 1) // m) * m


def _embeddings_kernel(ids_ref, pos_ref, table_ref, pe_ref, out_ref, *, scale):
    """One tile of TQ tokens: out = onehot(ids) @ table * scale + onehot(pos) @ pe."""
    tq = out_ref.shape[0]
    v_pad = table_ref.shape[0]
    l_pad = pe_ref.shape[0]

    ids = ids_ref[...]  # (TQ, 1) int32
    pos = pos_ref[...]  # (TQ, 1) int32

    # One-hot selection matrices (0/1 exactly representable in f32 -> exact gather).
    emb_oh = (ids == lax.broadcasted_iota(jnp.int32, (tq, v_pad), 1)).astype(jnp.float32)
    pe_oh = (pos == lax.broadcasted_iota(jnp.int32, (tq, l_pad), 1)).astype(jnp.float32)

    emb = jnp.dot(emb_oh, table_ref[...], preferred_element_type=jnp.float32)
    pos_enc = jnp.dot(pe_oh, pe_ref[...], preferred_element_type=jnp.float32)

    out_ref[...] = (emb * scale + pos_enc).astype(out_ref.dtype)


def embeddings_forward(encoded_words: jnp.ndarray,
                       embed_table: jnp.ndarray,
                       pe: jnp.ndarray,
                       *,
                       tq: int = 256) -> jnp.ndarray:
    """Pallas forward: embed(ids) * sqrt(d_model) + pe[:S]  (dropout = identity)."""
    B, S = encoded_words.shape
    V, D = embed_table.shape
    n_tokens = B * S
    scale = math.sqrt(D)

    # Shrink the token tile for tiny inputs (keep sublane multiple of 8).
    tq = max(8, min(tq, _round_up(n_tokens, 8)))
    num_tiles = pl.cdiv(n_tokens, tq)
    n_pad = num_tiles * tq
    pad = n_pad - n_tokens

    # Flat token ids and their within-sequence positions, padded to a TQ multiple.
    flat_ids = encoded_words.reshape(-1).astype(jnp.int32)
    positions = jnp.broadcast_to(jnp.arange(S, dtype=jnp.int32), (B, S)).reshape(-1)
    ids2d = jnp.pad(flat_ids, (0, pad)).reshape(n_pad, 1)
    pos2d = jnp.pad(positions, (0, pad)).reshape(n_pad, 1)

    # Pad lookup tables so the one-hot matmul contraction dim is MXU-friendly.
    v_pad = _round_up(V, 128)
    l_pad = _round_up(S, 128)
    table_p = jnp.pad(embed_table.astype(jnp.float32), ((0, v_pad - V), (0, 0)))
    pe_p = jnp.pad(pe[:S].astype(jnp.float32), ((0, l_pad - S), (0, 0)))

    kernel = functools.partial(_embeddings_kernel, scale=scale)

    cost = pl.CostEstimate(
        flops=2 * n_pad * (v_pad + l_pad) * D,
        transcendentals=0,
        bytes_accessed=(n_pad * D * 4                 # output
                        + n_pad * 2 * 4               # ids + positions
                        + (v_pad + l_pad) * D * 4),   # resident tables
    )

    out_flat = pl.pallas_call(
        kernel,
        out_shape=jax.ShapeDtypeStruct((n_pad, D), jnp.float32),
        grid_spec=pltpu.PrefetchScalarGridSpec(
            num_scalar_prefetch=0,
            grid=(num_tiles,),
            in_specs=[
                # Per-tile token ids / positions: (TQ, 1) int32.
                pl.BlockSpec((tq, 1), lambda i: (i, 0)),
                pl.BlockSpec((tq, 1), lambda i: (i, 0)),
                # Embedding table + PE slice: fully VMEM-resident across the grid.
                pl.BlockSpec((v_pad, D), lambda i: (0, 0)),
                pl.BlockSpec((l_pad, D), lambda i: (0, 0)),
            ],
            out_specs=pl.BlockSpec((tq, D), lambda i: (i, 0)),
        ),
        compiler_params=pltpu.CompilerParams(
            dimension_semantics=("parallel",)),
        cost_estimate=cost,
    )(ids2d, pos2d, table_p, pe_p)

    return out_flat[:n_tokens].reshape(B, S, D)


if __name__ == "__main__":
    vocab_size = 100
    d_model = 32
    max_len = 50
    batch = 2
    seq = 8

    key = jax.random.PRNGKey(0)
    k_emb, k_ids = jax.random.split(key)

    # nn.Embedding default init: N(0, 1)
    embed_table = jax.random.normal(k_emb, (vocab_size, d_model), dtype=jnp.float32)
    pe = create_positional_encoding(max_len, d_model)

    encoded_words = jax.random.randint(k_ids, (batch, seq), 0, vocab_size, dtype=jnp.int32)

    out = embeddings_forward(encoded_words, embed_table, pe)
    out = jax.block_until_ready(out)

    # Pure-JAX reference check.
    ref = embed_table[encoded_words] * math.sqrt(d_model) + pe[None, :seq, :]
    np.testing.assert_allclose(np.asarray(out), np.asarray(ref), rtol=1e-6, atol=1e-6)

    print("KERNEL_OK")
</pallas_src>

<mosaic_0001>
module attributes {stable_mosaic.version = 11 : i64} {
  func.func @_embeddings_kernel(%arg0: i32, %arg1: memref<16x1xi32, #tpu.memory_space<vmem>>, %arg2: memref<16x1xi32, #tpu.memory_space<vmem>>, %arg3: memref<128x32xf32, #tpu.memory_space<vmem>>, %arg4: memref<128x32xf32, #tpu.memory_space<vmem>>, %arg5: memref<16x32xf32, #tpu.memory_space<vmem>>) attributes {dimension_semantics = [#tpu.dimension_semantics<parallel>], iteration_bounds = array<i64: 1>, scalar_prefetch = 0 : i64, scratch_operands = 0 : i64, tpu.core_type = #tpu.core_type<tc>, window_params = [{transform_indices = @transform_0, window_bounds = array<i64: 16, 1>}, {transform_indices = @transform_1, window_bounds = array<i64: 16, 1>}, {pipeline_mode = #tpu.pipeline_mode<synchronous>, transform_indices = @transform_2, window_bounds = array<i64: 128, 32>}, {pipeline_mode = #tpu.pipeline_mode<synchronous>, transform_indices = @transform_3, window_bounds = array<i64: 128, 32>}, {transform_indices = @transform_4, window_bounds = array<i64: 16, 32>}]} {
    %c0 = arith.constant 0 : index
    %c0_0 = arith.constant 0 : index
    %0 = vector.load %arg1[%c0, %c0_0] : memref<16x1xi32, #tpu.memory_space<vmem>>, vector<16x1xi32>
    %c0_1 = arith.constant 0 : index
    %c0_2 = arith.constant 0 : index
    %1 = vector.load %arg2[%c0_1, %c0_2] : memref<16x1xi32, #tpu.memory_space<vmem>>, vector<16x1xi32>
    %2 = tpu.iota {dimensions = array<i32: 1>} : vector<16x128xi32>
    %3 = vector.broadcast %0 : vector<16x1xi32> to vector<16x128xi32>
    %4 = arith.cmpi eq, %3, %2 : vector<16x128xi32>
    %5 = arith.extui %4 : vector<16x128xi1> to vector<16x128xi32>
    %6 = arith.sitofp %5 : vector<16x128xi32> to vector<16x128xf32>
    %7 = tpu.iota {dimensions = array<i32: 1>} : vector<16x128xi32>
    %8 = vector.broadcast %1 : vector<16x1xi32> to vector<16x128xi32>
    %9 = arith.cmpi eq, %8, %7 : vector<16x128xi32>
    %10 = arith.extui %9 : vector<16x128xi1> to vector<16x128xi32>
    %11 = arith.sitofp %10 : vector<16x128xi32> to vector<16x128xf32>
    %c0_3 = arith.constant 0 : index
    %c0_4 = arith.constant 0 : index
    %12 = vector.load %arg3[%c0_3, %c0_4] : memref<128x32xf32, #tpu.memory_space<vmem>>, vector<128x32xf32>
    %cst = arith.constant dense<0.000000e+00> : vector<16x32xf32>
    %13 = tpu.matmul %6, %12, %cst {dimension_numbers = #tpu.dot_dimension_numbers<[1], [0], [0], [1], [0, 0, 1, 1], [], []>} : vector<16x128xf32>, vector<128x32xf32>, vector<16x32xf32> -> vector<16x32xf32>
    %c0_5 = arith.constant 0 : index
    %c0_6 = arith.constant 0 : index
    %14 = vector.load %arg4[%c0_5, %c0_6] : memref<128x32xf32, #tpu.memory_space<vmem>>, vector<128x32xf32>
    %cst_7 = arith.constant dense<0.000000e+00> : vector<16x32xf32>
    %15 = tpu.matmul %11, %14, %cst_7 {dimension_numbers = #tpu.dot_dimension_numbers<[1], [0], [0], [1], [0, 0, 1, 1], [], []>} : vector<16x128xf32>, vector<128x32xf32>, vector<16x32xf32> -> vector<16x32xf32>
    %cst_8 = arith.constant 5.65685415 : f32
    %16 = vector.broadcast %cst_8 : f32 to vector<16x32xf32>
    %17 = arith.mulf %13, %16 : vector<16x32xf32>
    %18 = arith.addf %17, %15 : vector<16x32xf32>
    %c0_9 = arith.constant 0 : index
    %c0_10 = arith.constant 0 : index
    %19 = vector.load %arg5[%c0_9, %c0_10] : memref<16x32xf32, #tpu.memory_space<vmem>>, vector<16x32xf32>
    tpu.vector_store %arg5[%c0_9, %c0_10], %18 {strides = array<i32>} : memref<16x32xf32, #tpu.memory_space<vmem>>, vector<16x32xf32>,
    return
  }
  func.func @transform_0(%arg0: i32) -> (i32, i32) {
    %c0_i32 = arith.constant 0 : i32
    %c0_i32_0 = arith.constant 0 : i32
    return %arg0, %c0_i32 : i32, i32
  }
  func.func @transform_1(%arg0: i32) -> (i32, i32) {
    %c0_i32 = arith.constant 0 : i32
    %c0_i32_0 = arith.constant 0 : i32
    return %arg0, %c0_i32 : i32, i32
  }
  func.func @transform_2(%arg0: i32) -> (i32, i32) {
    %c0_i32 = arith.constant 0 : i32
    %c0_i32_0 = arith.constant 0 : i32
    %c0_i32_1 = arith.constant 0 : i32
    return %c0_i32, %c0_i32_0 : i32, i32
  }
  func.func @transform_3(%arg0: i32) -> (i32, i32) {
    %c0_i32 = arith.constant 0 : i32
    %c0_i32_0 = arith.constant 0 : i32
    %c0_i32_1 = arith.constant 0 : i32
    return %c0_i32, %c0_i32_0 : i32, i32
  }
  func.func @transform_4(%arg0: i32) -> (i32, i32) {
    %c0_i32 = arith.constant 0 : i32
    %c0_i32_0 = arith.constant 0 : i32
    return %arg0, %c0_i32 : i32, i32
  }
}

</mosaic_0001>

<llo_original>
// kernel: tpu_custom_call.1
$region0: #{tpu_custom_call.1}
  #allocation0 [shape = 'u32[]', space=smem, size = 0x4, offset = 0x4, fixed_abs, tag = 'smem constant byte address 0x4 - core index']
  #allocation1 [shape = 'u32[144,128]{1,0:T(1,128)}', space=vmem, size = 0x12000, scoped, tag = 'internal scratch']
  %s0 = inlined_call_operand.vmem [shape: s32[16,1], index: 0, kind: input, shape index: {}]
  %s1 = inlined_call_operand.vmem [shape: s32[16,1], index: 1, kind: input, shape index: {}]
  %s2 = inlined_call_operand.vmem [shape: f32[128,32], index: 2, kind: input, shape index: {}]
  %s3 = inlined_call_operand.vmem [shape: f32[128,32], index: 3, kind: input, shape index: {}]
  %s4 = inlined_call_operand.hbm [shape: f32[16,32], index: 4, kind: output, shape index: {}]
  %s5 = sld [smem:[#allocation0]]
  $region26: #{tpu_custom_call.1} parent=0
    _
  %s7 = ssub.s32 1, %s5
  %s8 = scalar_select 0, %s7, %s5
  $region1: #{tpu_custom_call.1} parent=0
    #allocation2 [shape = 'u8[8192]{0}', space=vmem, size = 0x2000, scoped, tag = 'output window, operand 0, single buffered']
    #allocation3 [shape = 's32[1]{0}', space=sflag, size = 0x4, scoped, tag = 'scoped memory for tpu_custom_call.1']
    %9 = vsyncpa [#allocation3], 0
    // Predicated region
    $region2: #{tpu_custom_call.1} parent=1 // pred_check
      _
    $region3: #{tpu_custom_call.1} parent=1 // pred_check_branch
      %11 = sbr.rel (0) target = $region5
    $region4: #{tpu_custom_call.1} parent=1 // pred_region
      _
    $region5: #{tpu_custom_call.1} parent=1 // pred_fallthru
      _
    // Predicated region
    $region6: #{tpu_custom_call.1} parent=1 // pred_check
      _
    $region7: #{tpu_custom_call.1} parent=1 // pred_check_branch
      %13 = sbr.rel (0) target = $region9
    $region8: #{tpu_custom_call.1} parent=1 // pred_region
      _
    $region9: #{tpu_custom_call.1} parent=1 // pred_fallthru
      _
    // Predicated region
    $region10: #{tpu_custom_call.1} parent=1 // pred_check
      _
    $region11: #{tpu_custom_call.1} parent=1 // pred_check_branch
      %15 = sbr.rel (0) target = $region13
    $region12: #{tpu_custom_call.1} parent=1 // pred_region
      _
    $region13: #{tpu_custom_call.1} parent=1 // pred_fallthru
      _
    // Predicated region
    $region14: #{tpu_custom_call.1} parent=1 // pred_check
      _
    $region15: #{tpu_custom_call.1} parent=1 // pred_check_branch
      %17 = sbr.rel (0) target = $region17
    $region16: #{tpu_custom_call.1} parent=1 // pred_region
      _
    $region17: #{tpu_custom_call.1} parent=1 // pred_fallthru
      _
    %v18 = vld [vmem:[%s0] sm:$0xff]
    %v19 = vld [vmem:[%s0 + $0x8] sm:$0xff]
    %v20 = vld [vmem:[%s1] sm:$0xff]
    %v21 = vld [vmem:[%s1 + $0x8] sm:$0xff]
    %v22 = vlaneseq
    %v23 = vand.u32 %v22, 127
    %24 = vset.pattern.permute.xlu0 0
    %25 = vperm.xlu0 %24, %v18
    %v26 = vpop.permute.xlu0 %25
    %27 = vset.pattern.permute.xlu0 0
    %28 = vperm.xlu0 %27, %v19
    %v29 = vpop.permute.xlu0 %28
    %vm30 = vcmp.eq.s32.totalorder %v26, %v23
    %vm31 = vcmp.eq.s32.totalorder %v29, %v23
    %v32 = vsel %vm30, 1, 0
    %v33 = vsel %vm31, 1, 0
    %v34 = vcvt.s32.f32 %v32
    %v35 = vcvt.s32.f32 %v33
    %36 = vset.pattern.permute.xlu0 0
    %37 = vperm.xlu0 %36, %v20
    %v38 = vpop.permute.xlu0 %37
    %39 = vset.pattern.permute.xlu0 0
    %40 = vperm.xlu0 %39, %v21
    %v41 = vpop.permute.xlu0 %40
    %vm42 = vcmp.eq.s32.totalorder %v38, %v23
    %vm43 = vcmp.eq.s32.totalorder %v41, %v23
    %v44 = vsel %vm42, 1, 0
    %v45 = vsel %vm43, 1, 0
    %v46 = vcvt.s32.f32 %v44
    %v47 = vcvt.s32.f32 %v45
    %v48 = vld [vmem:[%s2] sm:$0xff]
    %v49 = vld [vmem:[%s2 + $0x8] sm:$0xff]
    %v50 = vld [vmem:[%s2 + $0x10] sm:$0xff]
    %v51 = vld [vmem:[%s2 + $0x18] sm:$0xff]
    %v52 = vld [vmem:[%s2 + $0x20] sm:$0xff]
    %v53 = vld [vmem:[%s2 + $0x28] sm:$0xff]
    %v54 = vld [vmem:[%s2 + $0x30] sm:$0xff]
    %v55 = vld [vmem:[%s2 + $0x38] sm:$0xff]
    %v56 = vld [vmem:[%s2 + $0x40] sm:$0xff]
    %v57 = vld [vmem:[%s2 + $0x48] sm:$0xff]
    %v58 = vld [vmem:[%s2 + $0x50] sm:$0xff]
    %v59 = vld [vmem:[%s2 + $0x58] sm:$0xff]
    %v60 = vld [vmem:[%s2 + $0x60] sm:$0xff]
    %v61 = vld [vmem:[%s2 + $0x68] sm:$0xff]
    %v62 = vld [vmem:[%s2 + $0x70] sm:$0xff]
    %v63 = vld [vmem:[%s2 + $0x78] sm:$0xff]
    %64 = vmatprep.subr.mxu0 0.0
    %65 = vmatpush1.msra.mxu0 %v48
    %66 = vmatprep.subr.mxu0 0.0
    %67 = vmatpush1.msra.mxu0 %v49
    %68 = vmatprep.subr.mxu0 0.0
    %69 = vmatpush1.msra.mxu0 %v50
    %70 = vmatprep.subr.mxu0 0.0
    %71 = vmatpush1.msra.mxu0 %v51
    %72 = vmatprep.subr.mxu0 0.0
    %73 = vmatpush1.msra.mxu0 %v52
    %74 = vmatprep.subr.mxu0 0.0
    %75 = vmatpush1.msra.mxu0 %v53
    %76 = vmatprep.subr.mxu0 0.0
    %77 = vmatpush1.msra.mxu0 %v54
    %78 = vmatprep.subr.mxu0 0.0
    %79 = vmatpush1.msra.mxu0 %v55
    %80 = vmatprep.subr.mxu0 0.0
    %81 = vmatpush1.msra.mxu0 %v56
    %82 = vmatprep.subr.mxu0 0.0
    %83 = vmatpush1.msra.mxu0 %v57
    %84 = vmatprep.subr.mxu0 0.0
    %85 = vmatpush1.msra.mxu0 %v58
    %86 = vmatprep.subr.mxu0 0.0
    %87 = vmatpush1.msra.mxu0 %v59
    %88 = vmatprep.subr.mxu0 0.0
    %89 = vmatpush1.msra.mxu0 %v60
    %90 = vmatprep.subr.mxu0 0.0
    %91 = vmatpush1.msra.mxu0 %v61
    %92 = vmatprep.subr.mxu0 0.0
    %93 = vmatpush1.msra.mxu0 %v62
    %94 = vmatprep.subr.mxu0 0.0
    %95 = vmatpush1.msra.mxu0 %v63
    %96 = vmatprep.subr.mxu0 0.0
    %97 = vmatpush1.msra.mxu0 0.0
    %98 = vmatprep.subr.mxu0 0.0
    %99 = vmatpush1.msra.mxu0 0.0
    %100 = vmatprep.subr.mxu0 0.0
    %101 = vmatpush1.msra.mxu0 0.0
    %102 = vmatprep.subr.mxu0 0.0
    %103 = vmatpush1.msra.mxu0 0.0
    %104 = vmatprep.subr.mxu0 0.0
    %105 = vmatpush1.msra.mxu0 0.0
    %106 = vmatprep.subr.mxu0 0.0
    %107 = vmatpush1.msra.mxu0 0.0
    %108 = vmatprep.subr.mxu0 0.0
    %109 = vmatpush1.msra.mxu0 0.0
    %110 = vmatprep.subr.mxu0 0.0
    %111 = vmatpush1.msra.mxu0 0.0
    %112 = vmatprep.subr.mxu0 0.0
    %113 = vmatpush1.msra.mxu0 0.0
    %114 = vmatprep.subr.mxu0 0.0
    %115 = vmatpush1.msra.mxu0 0.0
    %116 = vmatprep.subr.mxu0 0.0
    %117 = vmatpush1.msra.mxu0 0.0
    %118 = vmatprep.subr.mxu0 0.0
    %119 = vmatpush1.msra.mxu0 0.0
    %120 = vmatprep.subr.mxu0 0.0
    %121 = vmatpush1.msra.mxu0 0.0
    %122 = vmatprep.subr.mxu0 0.0
    %123 = vmatpush1.msra.mxu0 0.0
    %124 = vmatprep.subr.mxu0 0.0
    %125 = vmatpush1.msra.mxu0 0.0
    %126 = vmatprep.subr.mxu0 0.0
    %127 = vmatpush1.msra.mxu0 0.0
    %128 = vmatprep.mubr.f32.mxu0 0.0
    %129 = vmatmul.mubr.f32.gmra.mrb[0].mxu0 %v34
    %v130 = vpop.f32.mrb[0].mxu0
    %v131 = vadd.f32 0.0, %v130
    %v132 = vpop.f32.mrb[0].mxu0
    %133 = vmatprep.mubr.f32.mxu0 0.0
    %134 = vmatmul.mubr.f32.gmra.mrb[0].mxu0 %v35
    %v135 = vpop.f32.mrb[0].mxu0
    %v136 = vadd.f32 0.0, %v135
    %v137 = vpop.f32.mrb[0].mxu0
    %138 = vdwg.mxu0
    %v139 = vld [vmem:[%s3] sm:$0xff]
    %v140 = vld [vmem:[%s3 + $0x8] sm:$0xff]
    %v141 = vld [vmem:[%s3 + $0x10] sm:$0xff]
    %v142 = vld [vmem:[%s3 + $0x18] sm:$0xff]
    %v143 = vld [vmem:[%s3 + $0x20] sm:$0xff]
    %v144 = vld [vmem:[%s3 + $0x28] sm:$0xff]
    %v145 = vld [vmem:[%s3 + $0x30] sm:$0xff]
    %v146 = vld [vmem:[%s3 + $0x38] sm:$0xff]
    %v147 = vld [vmem:[%s3 + $0x40] sm:$0xff]
    %v148 = vld [vmem:[%s3 + $0x48] sm:$0xff]
    %v149 = vld [vmem:[%s3 + $0x50] sm:$0xff]
    %v150 = vld [vmem:[%s3 + $0x58] sm:$0xff]
    %v151 = vld [vmem:[%s3 + $0x60] sm:$0xff]
    %v152 = vld [vmem:[%s3 + $0x68] sm:$0xff]
    %v153 = vld [vmem:[%s3 + $0x70] sm:$0xff]
    %v154 = vld [vmem:[%s3 + $0x78] sm:$0xff]
    %155 = vmatprep.subr.mxu0 0.0
    %156 = vmatpush1.msra.mxu0 %v139
    %157 = vmatprep.subr.mxu0 0.0
    %158 = vmatpush1.msra.mxu0 %v140
    %159 = vmatprep.subr.mxu0 0.0
    %160 = vmatpush1.msra.mxu0 %v141
    %161 = vmatprep.subr.mxu0 0.0
    %162 = vmatpush1.msra.mxu0 %v142
    %163 = vmatprep.subr.mxu0 0.0
    %164 = vmatpush1.msra.mxu0 %v143
    %165 = vmatprep.subr.mxu0 0.0
    %166 = vmatpush1.msra.mxu0 %v144
    %167 = vmatprep.subr.mxu0 0.0
    %168 = vmatpush1.msra.mxu0 %v145
    %169 = vmatprep.subr.mxu0 0.0
    %170 = vmatpush1.msra.mxu0 %v146
    %171 = vmatprep.subr.mxu0 0.0
    %172 = vmatpush1.msra.mxu0 %v147
    %173 = vmatprep.subr.mxu0 0.0
    %174 = vmatpush1.msra.mxu0 %v148
    %175 = vmatprep.subr.mxu0 0.0
    %176 = vmatpush1.msra.mxu0 %v149
    %177 = vmatprep.subr.mxu0 0.0
    %178 = vmatpush1.msra.mxu0 %v150
    %179 = vmatprep.subr.mxu0 0.0
    %180 = vmatpush1.msra.mxu0 %v151
    %181 = vmatprep.subr.mxu0 0.0
    %182 = vmatpush1.msra.mxu0 %v152
    %183 = vmatprep.subr.mxu0 0.0
    %184 = vmatpush1.msra.mxu0 %v153
    %185 = vmatprep.subr.mxu0 0.0
    %186 = vmatpush1.msra.mxu0 %v154
    %187 = vmatprep.subr.mxu0 0.0
    %188 = vmatpush1.msra.mxu0 0.0
    %189 = vmatprep.subr.mxu0 0.0
    %190 = vmatpush1.msra.mxu0 0.0
    %191 = vmatprep.subr.mxu0 0.0
    %192 = vmatpush1.msra.mxu0 0.0
    %193 = vmatprep.subr.mxu0 0.0
    %194 = vmatpush1.msra.mxu0 0.0
    %195 = vmatprep.subr.mxu0 0.0
    %196 = vmatpush1.msra.mxu0 0.0
    %197 = vmatprep.subr.mxu0 0.0
    %198 = vmatpush1.msra.mxu0 0.0
    %199 = vmatprep.subr.mxu0 0.0
    %200 = vmatpush1.msra.mxu0 0.0
    %201 = vmatprep.subr.mxu0 0.0
    %202 = vmatpush1.msra.mxu0 0.0
    %203 = vmatprep.subr.mxu0 0.0
    %204 = vmatpush1.msra.mxu0 0.0
    %205 = vmatprep.subr.mxu0 0.0
    %206 = vmatpush1.msra.mxu0 0.0
    %207 = vmatprep.subr.mxu0 0.0
    %208 = vmatpush1.msra.mxu0 0.0
    %209 = vmatprep.subr.mxu0 0.0
    %210 = vmatpush1.msra.mxu0 0.0
    %211 = vmatprep.subr.mxu0 0.0
    %212 = vmatpush1.msra.mxu0 0.0
    %213 = vmatprep.subr.mxu0 0.0
    %214 = vmatpush1.msra.mxu0 0.0
    %215 = vmatprep.subr.mxu0 0.0
    %216 = vmatpush1.msra.mxu0 0.0
    %217 = vmatprep.subr.mxu0 0.0
    %218 = vmatpush1.msra.mxu0 0.0
    %219 = vmatprep.mubr.f32.mxu0 0.0
    %220 = vmatmul.mubr.f32.gmra.mrb[0].mxu0 %v46
    %v221 = vpop.f32.mrb[0].mxu0
    %v222 = vadd.f32 0.0, %v221
    %v223 = vpop.f32.mrb[0].mxu0
    %224 = vmatprep.mubr.f32.mxu0 0.0
    %225 = vmatmul.mubr.f32.gmra.mrb[0].mxu0 %v47
    %v226 = vpop.f32.mrb[0].mxu0
    %v227 = vadd.f32 0.0, %v226
    %v228 = vpop.f32.mrb[0].mxu0
    %229 = vdwg.mxu0
    %v230 = vmul.f32 %v131, 5.656854
    %v231 = vmul.f32 %v136, 5.656854
    %v232 = vadd.f32 %v230, %v222
    %v233 = vadd.f32 %v231, %v227
    %vm234 = vcmask 261120
    %235 = vst.msk [vmem:[#allocation2] sm:$0xff] %vm234, %v232
    %236 = vst.msk [vmem:[#allocation2 + $0x8] sm:$0xff] %vm234, %v233
    // Predicated region
    $region18: #{tpu_custom_call.1} parent=1 // pred_check
      _
    $region19: #{tpu_custom_call.1} parent=1 // pred_check_branch
      %238 = sbr.rel (0) target = $region21
    $region20: #{tpu_custom_call.1} parent=1 // pred_region
      %s240 = ssub.s32 256, 256
      %241 = vsyncadd [#allocation3], %s240
      %s242 = sshll.u32 [#allocation2], 4
      %s243 = int_to_ptr.vmem [resolvable:$true] %s242
      %248 = dma.vmem_to_hbm [thread:$0]  %s243, 256, %s4, [#allocation3], 128, 128, 8
    $region21: #{tpu_custom_call.1} parent=1 // pred_fallthru
      _
    // Predicated region
    $region22: #{tpu_custom_call.1} parent=1 // pred_check
      _
    $region23: #{tpu_custom_call.1} parent=1 // pred_check_branch
      %250 = sbr.rel (0) target = $region25
    $region24: #{tpu_custom_call.1} parent=1 // pred_region
      %251 = dma.done [#allocation3], 256
    $region25: #{tpu_custom_call.1} parent=1 // pred_fallthru
      _
    %252 = vsyncpa [#allocation3], 1

</llo_original>
